<compile_context>
chip_gen: v7x
topology: tpu7x:2x2x1
jax: 0.10.0
libtpu: 0.0.40
codegen_flags: <defaults>
</compile_context>

<pallas_src>
import jax
import jax.numpy as jnp
from jax import lax
from jax.experimental import pallas as pl
from jax.experimental.pallas import tpu as pltpu

BN_EPS = 1e-5
MXU_CIN_THRESHOLD = 8   # use the MXU for the channel contraction when C_in exceeds this


def _round_up(x, m):
    return ((x + m - 1) // m) * m


def _vmem_params():
    """Generation-aware (tile_budget_bytes, vmem_limit_bytes) derived from physical VMEM."""
    try:
        info = pltpu.get_tpu_info()
        cap = int(getattr(info, "vmem_capacity_bytes", 0) or 0)
    except Exception:
        cap = 0
    if cap <= 0:
        cap = 64 << 20                         # conservative (v7x-sized) fallback
    tile_budget = min(int(cap * 0.35), 48 << 20)   # ~45 MiB on v5e/v6e, ~22 MiB on v7x
    vmem_limit = min(int(cap * 0.75), 100 << 20)   # ~96 MiB on v5e/v6e, ~48 MiB on v7x
    return tile_budget, vmem_limit


def _pick_hw_tile(hw, c_in, c_out, budget_bytes):
    """Largest multiple-of-128 lane tile whose double-buffered f32 footprint fits the budget.

    Channel dims are rounded up to 8 sublanes (a (1,4,T) f32 block physically occupies 8
    sublanes), and both the input block and the output block are counted double-buffered.
    """
    cpi = _round_up(c_in, 8)
    cpo = _round_up(c_out, 8)
    per_lane_bytes = 2 * (cpi + cpo) * 4
    max_t = (budget_bytes // per_lane_bytes) // 128 * 128
    max_t = max(int(max_t), 128)
    return int(min(max_t, _round_up(hw, 128)))


def _stats_kernel(x_ref, sum_ref, sxx_ref):
    # x_ref: (1, C_in, T)   sum_ref: (1, C_in, 1)   sxx_ref: (1, C_in, C_in)
    t = pl.program_id(1)
    x = x_ref[0]                                   # (C_in, T)
    c_in = x.shape[0]

    @pl.when(t == 0)
    def _init():
        sum_ref[...] = jnp.zeros_like(sum_ref)
        sxx_ref[...] = jnp.zeros_like(sxx_ref)

    sum_ref[0] += jnp.sum(x, axis=1, keepdims=True)

    if c_in <= MXU_CIN_THRESHOLD:
        # Tiny channel count: C_in broadcast multiplies + lane reductions (VPU/XLU), columns
        # assembled with an iota mask; the MXU would be <1% utilized here.
        lane = lax.broadcasted_iota(jnp.int32, (c_in, c_in), 1)
        part = jnp.zeros((c_in, c_in), jnp.float32)
        for i in range(c_in):
            col = jnp.sum(x * x[i:i + 1, :], axis=1, keepdims=True)   # (C_in, 1)
            part = part + jnp.where(lane == i, col, 0.0)
        sxx_ref[0] += part
    else:
        # Larger C_in: push the Gram-matrix accumulation onto the otherwise-idle MXU.
        sxx_ref[0] += jnp.dot(x, x.T, preferred_element_type=jnp.float32)


def _apply_kernel(x_ref, w_ref, shift_ref, o_ref):
    # x_ref: (1, C_in, T)   w_ref: (C_out, C_in) (BN scale pre-folded)   shift_ref: (C_out, 1)
    x = x_ref[0]                                   # (C_in, T)
    w = w_ref[...]
    c_in = x.shape[0]
    if c_in <= MXU_CIN_THRESHOLD:
        y = w[:, 0:1] * x[0:1, :]
        for c in range(1, c_in):
            y = y + w[:, c:c + 1] * x[c:c + 1, :]
    else:
        y = jnp.dot(w, x, preferred_element_type=jnp.float32)
    o_ref[0] = jnp.maximum(y + shift_ref[...], 0.0)


def pointwise_conv_block(x_nchw, w_conv, b_conv, gamma, beta):
    """x_nchw: (N, C_in, H, W) f32.  w_conv: (C_out, C_in) (1x1 kernel squeezed).  Returns NCHW."""
    del b_conv  # cancels exactly through the training-mode BatchNorm mean subtraction
    N, C_in, H, W = x_nchw.shape
    C_out = w_conv.shape[0]
    HW = H * W
    M = N * HW

    budget, vmem_limit = _vmem_params()
    t_hw = _pick_hw_tile(HW, C_in, C_out, budget)
    n_t = -(-HW // t_hw)
    HWp = n_t * t_hw

    x3 = x_nchw.reshape(N, C_in, HW)               # free view of contiguous NCHW
    if HWp != HW:
        # Zero lane padding: contributes nothing to sum_x / Sxx; apply-pass pad lanes are sliced off.
        x3 = jnp.pad(x3, ((0, 0), (0, 0), (0, HWp - HW)))
    w2 = w_conv.astype(jnp.float32)                # (C_out, C_in) — no transpose needed
    g2 = gamma.reshape(C_out, 1).astype(jnp.float32)
    b2 = beta.reshape(C_out, 1).astype(jnp.float32)

    # ---- Pass 1: per-image input moments (pure streaming, no y compute). -------------------
    sums, sxx = pl.pallas_call(
        _stats_kernel,
        out_shape=(jax.ShapeDtypeStruct((N, C_in, 1), jnp.float32),
                   jax.ShapeDtypeStruct((N, C_in, C_in), jnp.float32)),
        grid_spec=pltpu.PrefetchScalarGridSpec(
            num_scalar_prefetch=0,
            grid=(N, n_t),
            in_specs=[pl.BlockSpec((1, C_in, t_hw), lambda n, t: (n, 0, t))],
            out_specs=[pl.BlockSpec((1, C_in, 1), lambda n, t: (n, 0, 0)),
                       pl.BlockSpec((1, C_in, C_in), lambda n, t: (n, 0, 0))],
        ),
        compiler_params=pltpu.CompilerParams(
            # n is parallel (independent per-image partials -> both v7x TCs usable);
            # t is the per-image reduction axis (resident accumulator blocks), kept last.
            dimension_semantics=("parallel", "arbitrary"),
            vmem_limit_bytes=vmem_limit,
        ),
    )(x3)

    # ---- Tiny JAX finalize: per-channel scale/shift, BN scale folded into the weights. -----
    inv_m = 1.0 / M
    mean_x = jnp.sum(sums, axis=0) * inv_m                          # (C_in, 1)
    sxx_tot = jnp.sum(sxx, axis=0)                                  # (C_in, C_in)
    mean_y = w2 @ mean_x                                            # (C_out, 1)
    ey2 = jnp.sum((w2 @ sxx_tot) * w2, axis=1, keepdims=True) * inv_m
    var = jnp.maximum(ey2 - mean_y * mean_y, 0.0)                   # clamp vs. E[y^2]-mean^2 cancellation
    scale = g2 * lax.rsqrt(var + BN_EPS)                            # (C_out, 1)
    shift = b2 - mean_y * scale                                     # (C_out, 1)
    w_fold = scale * w2                                             # (C_out, C_in)

    # ---- Pass 2: relu(W' @ x + shift), fully parallel grid, lane-dense output. -------------
    out3 = pl.pallas_call(
        _apply_kernel,
        out_shape=jax.ShapeDtypeStruct((N, C_out, HWp), jnp.float32),
        grid_spec=pltpu.PrefetchScalarGridSpec(
            num_scalar_prefetch=0,
            grid=(N, n_t),
            in_specs=[pl.BlockSpec((1, C_in, t_hw), lambda n, t: (n, 0, t)),
                      pl.BlockSpec((C_out, C_in), lambda n, t: (0, 0)),   # resident folded weights
                      pl.BlockSpec((C_out, 1), lambda n, t: (0, 0))],     # resident shift
            out_specs=pl.BlockSpec((1, C_out, t_hw), lambda n, t: (n, 0, t)),
        ),
        compiler_params=pltpu.CompilerParams(
            dimension_semantics=("parallel", "parallel"),
            vmem_limit_bytes=vmem_limit,
        ),
    )(x3, w_fold, shift)

    if HWp != HW:
        out3 = out3[:, :, :HW]
    return out3.reshape(N, C_out, H, W)            # free view back to NCHW


def reference(x_nchw, w_conv, b_conv, gamma, beta):
    """Pure-JAX reference of Conv2d(1x1, bias) + BatchNorm2d(train) + ReLU."""
    y = jnp.einsum("nchw,oc->nohw", x_nchw, w_conv) + b_conv[None, :, None, None]
    mean = jnp.mean(y, axis=(0, 2, 3), keepdims=True)
    var = jnp.mean((y - mean) ** 2, axis=(0, 2, 3), keepdims=True)
    y_hat = (y - mean) / jnp.sqrt(var + BN_EPS)
    out = gamma[None, :, None, None] * y_hat + beta[None, :, None, None]
    return jnp.maximum(out, 0.0)


if __name__ == "__main__":
    key = jax.random.PRNGKey(0)
    k_x, k_w, k_b = jax.random.split(key, 3)

    N, C_in, C_out, H, W = 2, 4, 8, 16, 16

    x = jax.random.normal(k_x, (N, C_in, H, W), dtype=jnp.float32)

    # Deterministic synthetic parameter init (Conv2d 1x1 weight squeezed to (C_out, C_in)).
    fan_in = C_in
    bound = 1.0 / (fan_in ** 0.5)
    w_conv = jax.random.uniform(k_w, (C_out, C_in), jnp.float32, -bound, bound)
    b_conv = jax.random.uniform(k_b, (C_out,), jnp.float32, -bound, bound)
    gamma = jnp.ones((C_out,), jnp.float32)   # BatchNorm2d default init
    beta = jnp.zeros((C_out,), jnp.float32)

    out = jax.block_until_ready(pointwise_conv_block(x, w_conv, b_conv, gamma, beta))
    ref = jax.block_until_ready(reference(x, w_conv, b_conv, gamma, beta))

    assert out.shape == (N, C_out, H, W)
    err = float(jnp.max(jnp.abs(out - ref)))
    assert jnp.allclose(out, ref, atol=1e-4, rtol=1e-4), err

    print("KERNEL_OK")
</pallas_src>

<mosaic_0001>
module attributes {stable_mosaic.version = 11 : i64} {
  func.func @_stats_kernel(%arg0: i32, %arg1: i32, %arg2: memref<1x4x256xf32, #tpu.memory_space<vmem>>, %arg3: memref<1x4x1xf32, #tpu.memory_space<vmem>>, %arg4: memref<1x4x4xf32, #tpu.memory_space<vmem>>) attributes {dimension_semantics = [#tpu.dimension_semantics<parallel>, #tpu.dimension_semantics<arbitrary>], iteration_bounds = array<i64: 2, 1>, scalar_prefetch = 0 : i64, scratch_operands = 0 : i64, tpu.core_type = #tpu.core_type<tc>, window_params = [{transform_indices = @transform_0, window_bounds = array<i64: 1, 4, 256>}, {transform_indices = @transform_1, window_bounds = array<i64: 1, 4, 1>}, {transform_indices = @transform_2, window_bounds = array<i64: 1, 4, 4>}]} {
    %c0 = arith.constant 0 : index
    %c0_0 = arith.constant 0 : index
    %c0_1 = arith.constant 0 : index
    %0 = vector.load %arg2[%c0, %c0_0, %c0_1] : memref<1x4x256xf32, #tpu.memory_space<vmem>>, vector<1x4x256xf32>
    %1 = vector.shape_cast %0 : vector<1x4x256xf32> to vector<4x256xf32>
    %c0_i32 = arith.constant 0 : i32
    %2 = arith.cmpi eq, %arg1, %c0_i32 : i32
    %3 = arith.extui %2 : i1 to i32
    %c0_i32_2 = arith.constant 0 : i32
    %4 = arith.cmpi ne, %3, %c0_i32_2 : i32
    scf.if %4 {
      %cst_25 = arith.constant 0.000000e+00 : f32
      %69 = vector.broadcast %cst_25 : f32 to vector<1x4x1xf32>
      %c0_26 = arith.constant 0 : index
      %c0_27 = arith.constant 0 : index
      %c0_28 = arith.constant 0 : index
      %70 = vector.load %arg3[%c0_26, %c0_27, %c0_28] : memref<1x4x1xf32, #tpu.memory_space<vmem>>, vector<1x4x1xf32>
      tpu.vector_store %arg3[%c0_26, %c0_27, %c0_28], %69 {strides = array<i32>} : memref<1x4x1xf32, #tpu.memory_space<vmem>>, vector<1x4x1xf32>,
      %cst_29 = arith.constant 0.000000e+00 : f32
      %71 = vector.broadcast %cst_29 : f32 to vector<1x4x4xf32>
      %c0_30 = arith.constant 0 : index
      %c0_31 = arith.constant 0 : index
      %c0_32 = arith.constant 0 : index
      %72 = vector.load %arg4[%c0_30, %c0_31, %c0_32] : memref<1x4x4xf32, #tpu.memory_space<vmem>>, vector<1x4x4xf32>
      tpu.vector_store %arg4[%c0_30, %c0_31, %c0_32], %71 {strides = array<i32>} : memref<1x4x4xf32, #tpu.memory_space<vmem>>, vector<1x4x4xf32>,
    } else {
    }
    %c0_3 = arith.constant 0 : index
    %c0_4 = arith.constant 0 : index
    %c0_5 = arith.constant 0 : index
    %5 = vector.load %arg3[%c0_3, %c0_4, %c0_5] : memref<1x4x1xf32, #tpu.memory_space<vmem>>, vector<1x4x1xf32>
    %6 = vector.shape_cast %5 : vector<1x4x1xf32> to vector<4x1xf32>
    %cst = arith.constant dense<0.000000e+00> : vector<4xf32>
    %7 = vector.multi_reduction <add>, %1, %cst [1] : vector<4x256xf32> to vector<4xf32>
    %8 = vector.shape_cast %7 : vector<4xf32> to vector<4x1xf32>
    %9 = arith.addf %6, %8 : vector<4x1xf32>
    %c0_6 = arith.constant 0 : index
    %c0_7 = arith.constant 0 : index
    %c0_8 = arith.constant 0 : index
    %10 = vector.load %arg3[%c0_6, %c0_7, %c0_8] : memref<1x4x1xf32, #tpu.memory_space<vmem>>, vector<1x4x1xf32>
    %11 = vector.shape_cast %10 : vector<1x4x1xf32> to vector<4x1xf32>
    %12 = vector.shape_cast %9 : vector<4x1xf32> to vector<1x4x1xf32>
    tpu.vector_store %arg3[%c0_6, %c0_7, %c0_8], %12 {strides = array<i32>} : memref<1x4x1xf32, #tpu.memory_space<vmem>>, vector<1x4x1xf32>,
    %13 = tpu.iota {dimensions = array<i32: 1>} : vector<4x4xi32>
    %cst_9 = arith.constant 0.000000e+00 : f32
    %14 = vector.broadcast %cst_9 : f32 to vector<4x4xf32>
    %15 = vector.extract_strided_slice %1 {offsets = [0, 0], sizes = [1, 256], strides = [1, 1]} : vector<4x256xf32> to vector<1x256xf32>
    %16 = vector.broadcast %15 : vector<1x256xf32> to vector<4x256xf32>
    %17 = arith.mulf %1, %16 : vector<4x256xf32>
    %cst_10 = arith.constant dense<0.000000e+00> : vector<4xf32>
    %18 = vector.multi_reduction <add>, %17, %cst_10 [1] : vector<4x256xf32> to vector<4xf32>
    %19 = vector.shape_cast %18 : vector<4xf32> to vector<4x1xf32>
    %c0_i32_11 = arith.constant 0 : i32
    %20 = vector.broadcast %c0_i32_11 : i32 to vector<4x4xi32>
    %21 = arith.cmpi eq, %13, %20 : vector<4x4xi32>
    %cst_12 = arith.constant 0.000000e+00 : f32
    %22 = vector.shape_cast %19 : vector<4x1xf32> to vector<4x1xf32>
    %23 = vector.broadcast %22 : vector<4x1xf32> to vector<4x4xf32>
    %24 = vector.broadcast %cst_12 : f32 to vector<4x4xf32>
    %25 = arith.select %21, %23, %24 : vector<4x4xi1>, vector<4x4xf32>
    %26 = arith.addf %14, %25 : vector<4x4xf32>
    %27 = vector.extract_strided_slice %1 {offsets = [1, 0], sizes = [1, 256], strides = [1, 1]} : vector<4x256xf32> to vector<1x256xf32>
    %28 = vector.broadcast %27 : vector<1x256xf32> to vector<4x256xf32>
    %29 = arith.mulf %1, %28 : vector<4x256xf32>
    %cst_13 = arith.constant dense<0.000000e+00> : vector<4xf32>
    %30 = vector.multi_reduction <add>, %29, %cst_13 [1] : vector<4x256xf32> to vector<4xf32>
    %31 = vector.shape_cast %30 : vector<4xf32> to vector<4x1xf32>
    %c1_i32 = arith.constant 1 : i32
    %32 = vector.broadcast %c1_i32 : i32 to vector<4x4xi32>
    %33 = arith.cmpi eq, %13, %32 : vector<4x4xi32>
    %cst_14 = arith.constant 0.000000e+00 : f32
    %34 = vector.shape_cast %31 : vector<4x1xf32> to vector<4x1xf32>
    %35 = vector.broadcast %34 : vector<4x1xf32> to vector<4x4xf32>
    %36 = vector.broadcast %cst_14 : f32 to vector<4x4xf32>
    %37 = arith.select %33, %35, %36 : vector<4x4xi1>, vector<4x4xf32>
    %38 = arith.addf %26, %37 : vector<4x4xf32>
    %39 = vector.extract_strided_slice %1 {offsets = [2, 0], sizes = [1, 256], strides = [1, 1]} : vector<4x256xf32> to vector<1x256xf32>
    %40 = vector.broadcast %39 : vector<1x256xf32> to vector<4x256xf32>
    %41 = arith.mulf %1, %40 : vector<4x256xf32>
    %cst_15 = arith.constant dense<0.000000e+00> : vector<4xf32>
    %42 = vector.multi_reduction <add>, %41, %cst_15 [1] : vector<4x256xf32> to vector<4xf32>
    %43 = vector.shape_cast %42 : vector<4xf32> to vector<4x1xf32>
    %c2_i32 = arith.constant 2 : i32
    %44 = vector.broadcast %c2_i32 : i32 to vector<4x4xi32>
    %45 = arith.cmpi eq, %13, %44 : vector<4x4xi32>
    %cst_16 = arith.constant 0.000000e+00 : f32
    %46 = vector.shape_cast %43 : vector<4x1xf32> to vector<4x1xf32>
    %47 = vector.broadcast %46 : vector<4x1xf32> to vector<4x4xf32>
    %48 = vector.broadcast %cst_16 : f32 to vector<4x4xf32>
    %49 = arith.select %45, %47, %48 : vector<4x4xi1>, vector<4x4xf32>
    %50 = arith.addf %38, %49 : vector<4x4xf32>
    %51 = vector.extract_strided_slice %1 {offsets = [3, 0], sizes = [1, 256], strides = [1, 1]} : vector<4x256xf32> to vector<1x256xf32>
    %52 = vector.broadcast %51 : vector<1x256xf32> to vector<4x256xf32>
    %53 = arith.mulf %1, %52 : vector<4x256xf32>
    %cst_17 = arith.constant dense<0.000000e+00> : vector<4xf32>
    %54 = vector.multi_reduction <add>, %53, %cst_17 [1] : vector<4x256xf32> to vector<4xf32>
    %55 = vector.shape_cast %54 : vector<4xf32> to vector<4x1xf32>
    %c3_i32 = arith.constant 3 : i32
    %56 = vector.broadcast %c3_i32 : i32 to vector<4x4xi32>
    %57 = arith.cmpi eq, %13, %56 : vector<4x4xi32>
    %cst_18 = arith.constant 0.000000e+00 : f32
    %58 = vector.shape_cast %55 : vector<4x1xf32> to vector<4x1xf32>
    %59 = vector.broadcast %58 : vector<4x1xf32> to vector<4x4xf32>
    %60 = vector.broadcast %cst_18 : f32 to vector<4x4xf32>
    %61 = arith.select %57, %59, %60 : vector<4x4xi1>, vector<4x4xf32>
    %62 = arith.addf %50, %61 : vector<4x4xf32>
    %c0_19 = arith.constant 0 : index
    %c0_20 = arith.constant 0 : index
    %c0_21 = arith.constant 0 : index
    %63 = vector.load %arg4[%c0_19, %c0_20, %c0_21] : memref<1x4x4xf32, #tpu.memory_space<vmem>>, vector<1x4x4xf32>
    %64 = vector.shape_cast %63 : vector<1x4x4xf32> to vector<4x4xf32>
    %65 = arith.addf %64, %62 : vector<4x4xf32>
    %c0_22 = arith.constant 0 : index
    %c0_23 = arith.constant 0 : index
    %c0_24 = arith.constant 0 : index
    %66 = vector.load %arg4[%c0_22, %c0_23, %c0_24] : memref<1x4x4xf32, #tpu.memory_space<vmem>>, vector<1x4x4xf32>
    %67 = vector.shape_cast %66 : vector<1x4x4xf32> to vector<4x4xf32>
    %68 = vector.shape_cast %65 : vector<4x4xf32> to vector<1x4x4xf32>
    tpu.vector_store %arg4[%c0_22, %c0_23, %c0_24], %68 {strides = array<i32>} : memref<1x4x4xf32, #tpu.memory_space<vmem>>, vector<1x4x4xf32>,
    return
  }
  func.func @transform_0(%arg0: i32, %arg1: i32) -> (i32, i32, i32) {
    %c0_i32 = arith.constant 0 : i32
    %c0_i32_0 = arith.constant 0 : i32
    return %arg0, %c0_i32, %arg1 : i32, i32, i32
  }
  func.func @transform_1(%arg0: i32, %arg1: i32) -> (i32, i32, i32) {
    %c0_i32 = arith.constant 0 : i32
    %c0_i32_0 = arith.constant 0 : i32
    %c0_i32_1 = arith.constant 0 : i32
    return %arg0, %c0_i32, %c0_i32_0 : i32, i32, i32
  }
  func.func @transform_2(%arg0: i32, %arg1: i32) -> (i32, i32, i32) {
    %c0_i32 = arith.constant 0 : i32
    %c0_i32_0 = arith.constant 0 : i32
    %c0_i32_1 = arith.constant 0 : i32
    return %arg0, %c0_i32, %c0_i32_0 : i32, i32, i32
  }
}

</mosaic_0001>

<llo_original>
// kernel: tpu_custom_call.1
$region0: #{tpu_custom_call.1}
  #allocation0 [shape = 'u32[]', space=smem, size = 0x4, offset = 0x4, fixed_abs, tag = 'smem constant byte address 0x4 - core index']
  #allocation1 [shape = 'u32[144,128]{1,0:T(1,128)}', space=vmem, size = 0x12000, scoped, tag = 'internal scratch']
  %s0 = inlined_call_operand.hbm [shape: f32[2,4,256], index: 0, kind: input, shape index: {}]
  %s1 = inlined_call_operand.vmem [shape: f32[2,4,1], index: 1, kind: output, shape index: {0}]
  %s2 = inlined_call_operand.hbm [shape: f32[2,4,4], index: 2, kind: output, shape index: {1}]
  %3 = xla_tuple %s1, %s2
  %s4 = sld [smem:[#allocation0]]
  $region53: #{tpu_custom_call.1} parent=0
    _
  %s6 = ssub.s32 1, %s4
  %s7 = scalar_select 0, %s6, %s4
  $region1: #{tpu_custom_call.1} parent=0
    #allocation2 [shape = 'u8[8192]{0}', space=vmem, size = 0x2000, scoped, tag = 'input window, operand 0']
    #allocation3 [shape = 's32[2]{0}', space=sflag, size = 0x8, scoped, tag = 'scoped memory for tpu_custom_call.1']
    #allocation4 [shape = 's32[2]{0}', space=sflag, size = 0x8, scoped, tag = 'scoped memory for tpu_custom_call.1']
    #allocation5 [shape = 'u8[4096]{0}', space=vmem, size = 0x1000, scoped, tag = 'output window, operand 1']
    %8 = vsyncpa [#allocation3], 0
    %s9 = scalar_lea.sflag [#allocation3], 1
    %10 = vsyncpa %s9, 0
    %11 = vsyncpa [#allocation4], 0
    %s12 = scalar_lea.sflag [#allocation4], 1
    %13 = vsyncpa %s12, 0
    loop: start=0, step=1, limit=4
    $region2: #{tpu_custom_call.1} parent=1 // loop_pre_header
      _
    $region3: #{tpu_custom_call.1} parent=1 // loop_header
      %s15 = sphi 0, %s19
      %p16 = scmp.ge.s32.totalorder %s15, 4
      %s22 = sphi 0, %s34
      %s23 = sphi 0, %s30
      %s24 = sphi 0, %s22
      %s25 = sphi 0, %s23
      %s26 = sphi 0, %s24
      %s27 = sphi 0, %s25
      %s39 = sphi 0, %s41
      %s42 = sphi 0, %s39
      %s43 = sphi 0, %s42
      %s59 = sphi 0, %s43
      %s65 = sphi 0, %s67
      %s68 = sphi 0, %s65
      %s69 = sphi 0, %s68
      %s85 = sphi 0, %s69
      %s91 = sphi 0, %s93
      %s94 = sphi 0, %s91
      %s95 = sphi 0, %s94
      %s111 = sphi 0, %s95
    $region4: #{tpu_custom_call.1} parent=1 // loop_header_branch
      %18 = sbr.rel (%p16) target = $region8
    $region5: #{tpu_custom_call.1} parent=1 // loop_body
      %s20 = ssub.s32 %s15, 1
      %s21 = ssub.s32 %s15, 2
      %s28 = sadd.s32 1, %s23
      %p29 = scmp.ge.s32.totalorder %s28, 1
      %s30 = scalar_select %p29, 0, %s28
      %s31 = sadd.s32 1, %s22
      %s32 = scalar_select %p29, %s31, %s22
      %p33 = scmp.ge.s32.totalorder %s32, 2
      %s34 = scalar_select %p33, 0, %s32
      %s35 = ssub.s32 %s22, %s34
      %s36 = ssub.s32 %s23, %s30
      %s37 = sor.u32 %s35, %s36
      %p38 = scmp.eq.s32.totalorder %s37, 0
      %s40 = sadd.s32 %s39, 1
      %s41 = scalar_select %p38, %s39, %s40
      %p44 = pneg %p38
      %p45 = scmp.eq.s32.totalorder %s15, 1
      %p46 = por %p44, %p45
      %p47 = scmp.ne.s32.totalorder %s39, %s42
      %p48 = scmp.eq.s32.totalorder %s15, 0
      %p49 = por %p47, %p48
      %p50 = scmp.ne.s32.totalorder %s39, %s42
      %p51 = scmp.eq.s32.totalorder %s20, 1
      %p52 = por %p50, %p51
      %p53 = scmp.ne.s32.totalorder %s42, %s43
      %p54 = scmp.eq.s32.totalorder %s20, 0
      %p55 = por %p53, %p54
      %p56 = scmp.ne.s32.totalorder %s42, %s43
      %p57 = scmp.eq.s32.totalorder %s21, 1
      %p58 = por %p56, %p57
      %p60 = scmp.ne.s32.totalorder %s43, %s59
      %p61 = scmp.eq.s32.totalorder %s21, 0
      %p62 = por %p60, %p61
      %s63 = ssub.s32 %s22, %s34
      %p64 = scmp.eq.s32.totalorder %s63, 0
      %s66 = sadd.s32 %s65, 1
      %s67 = scalar_select %p64, %s65, %s66
      %p70 = pneg %p64
      %p71 = scmp.eq.s32.totalorder %s15, 1
      %p72 = por %p70, %p71
      %p73 = scmp.ne.s32.totalorder %s65, %s68
      %p74 = scmp.eq.s32.totalorder %s15, 0
      %p75 = por %p73, %p74
      %p76 = scmp.ne.s32.totalorder %s65, %s68
      %p77 = scmp.eq.s32.totalorder %s20, 1
      %p78 = por %p76, %p77
      %p79 = scmp.ne.s32.totalorder %s68, %s69
      %p80 = scmp.eq.s32.totalorder %s20, 0
      %p81 = por %p79, %p80
      %p82 = scmp.ne.s32.totalorder %s68, %s69
      %p83 = scmp.eq.s32.totalorder %s21, 1
      %p84 = por %p82, %p83
      %p86 = scmp.ne.s32.totalorder %s69, %s85
      %p87 = scmp.eq.s32.totalorder %s21, 0
      %p88 = por %p86, %p87
      %s89 = ssub.s32 %s22, %s34
      %p90 = scmp.eq.s32.totalorder %s89, 0
      %s92 = sadd.s32 %s91, 1
      %s93 = scalar_select %p90, %s91, %s92
      %p96 = pneg %p90
      %p97 = scmp.eq.s32.totalorder %s15, 1
      %p98 = por %p96, %p97
      %p99 = scmp.ne.s32.totalorder %s91, %s94
      %p100 = scmp.eq.s32.totalorder %s15, 0
      %p101 = por %p99, %p100
      %p102 = scmp.ne.s32.totalorder %s91, %s94
      %p103 = scmp.eq.s32.totalorder %s20, 1
      %p104 = por %p102, %p103
      %p105 = scmp.ne.s32.totalorder %s94, %s95
      %p106 = scmp.eq.s32.totalorder %s20, 0
      %p107 = por %p105, %p106
      %p108 = scmp.ne.s32.totalorder %s94, %s95
      %p109 = scmp.eq.s32.totalorder %s21, 1
      %p110 = por %p108, %p109
      %p112 = scmp.ne.s32.totalorder %s95, %s111
      %p113 = scmp.eq.s32.totalorder %s21, 0
      %p114 = por %p112, %p113
      %p115 = scmp.le.s32.totalorder 1, %s15
      %p116 = scmp.lt.s32.totalorder %s15, 3
      %p117 = pnand %p115, %p116
      %p118 = pneg %p117
      // Predicated region
      $region9: #{tpu_custom_call.1} parent=5 // pred_check
        _
      $region10: #{tpu_custom_call.1} parent=5 // pred_check_branch
        %120 = sbr.rel (%p117) target = $region12
      $region11: #{tpu_custom_call.1} parent=5 // pred_region
        %s121 = ssub.s32 %s15, 1
      $region12: #{tpu_custom_call.1} parent=5 // pred_fallthru
        _
      %p122 = scmp.lt.s32.totalorder %s15, 2
      // Predicated region
      $region13: #{tpu_custom_call.1} parent=5 // pred_check
        %p123 = pneg %p122
      $region14: #{tpu_custom_call.1} parent=5 // pred_check_branch
        %125 = sbr.rel (%p123) target = $region16
      $region15: #{tpu_custom_call.1} parent=5 // pred_region
        // Predicated region
        $region17: #{tpu_custom_call.1} parent=15 // pred_check
          %p126 = pneg %p49
        $region18: #{tpu_custom_call.1} parent=15 // pred_check_branch
          %128 = sbr.rel (%p126) target = $region20
        $region19: #{tpu_custom_call.1} parent=15 // pred_region
          %s129 = sand.u32 %s39, 1
          %s130 = scalar_lea.sflag [#allocation3], %s129
          %s131 = sand.u32 %s39, 1
          %s132 = smul.addr %s131, 8
          %s133 = scalar_lea.vmem [#allocation2], %s132
          %s134 = smul.u32 2, %s23
          %s136 = ssub.s32 128, 128
          %137 = vsyncadd %s130, %s136
          %s138 = smul.addr %s22, 2
          %s139 = sadd.s32 %s134, %s138
          %s140 = smul.addr %s139, 64
          %s141 = scalar_lea.hbm %s0, %s140
          %s143 = sshll.u32 %s133, 4
          %s144 = int_to_ptr.vmem [resolvable:$true] %s143
          %146 = dma.hbm_to_vmem [thread:$0]  %s141, 128, %s144, %s130
        $region20: #{tpu_custom_call.1} parent=15 // pred_fallthru
          _
      $region16: #{tpu_custom_call.1} parent=5 // pred_fallthru
        _
      %p147 = scmp.le.s32.totalorder 1, %s15
      %p148 = scmp.lt.s32.totalorder %s15, 3
      %p149 = pnand %p147, %p148
      %p150 = pneg %p149
      // Predicated region
      $region21: #{tpu_custom_call.1} parent=5 // pred_check
        _
      $region22: #{tpu_custom_call.1} parent=5 // pred_check_branch
        %152 = sbr.rel (%p149) target = $region24
      $region23: #{tpu_custom_call.1} parent=5 // pred_region
        %s153 = ssub.s32 %s15, 1
        %s154 = sand.u32 %s42, 1
        %s155 = scalar_lea.sflag [#allocation3], %s154
        %s156 = sand.u32 %s42, 1
        %s157 = smul.addr %s156, 8
        %s158 = scalar_lea.vmem [#allocation2], %s157
        // Predicated region
        $region25: #{tpu_custom_call.1} parent=23 // pred_check
          %p159 = pneg %p55
        $region26: #{tpu_custom_call.1} parent=23 // pred_check_branch
          %161 = sbr.rel (%p159) target = $region28
        $region27: #{tpu_custom_call.1} parent=23 // pred_region
          %162 = dma.done %s155, 128
        $region28: #{tpu_custom_call.1} parent=23 // pred_fallthru
          _
        %s163 = sand.u32 %s42, 1
        %s164 = scalar_lea.sflag [#allocation3], %s163
        %s165 = sand.u32 %s42, 1
        %s166 = smul.addr %s165, 8
        %s167 = scalar_lea.vmem [#allocation2], %s166
        %p168 = pneg %p55
        %p169 = pneg %p52
        %p170 = pneg %p81
        %p171 = pneg %p78
        %p172 = scmp.lt.s32.totalorder %s24, 1
        %s173 = scalar_select %p172, %s24, 1
        %s174 = smul.addr %s173, 4
        %s175 = scalar_lea.vmem %s1, %s174
        %p176 = pneg %p107
        %p177 = pneg %p104
        %s178 = sand.u32 %s94, 1
        %s179 = scalar_lea.sflag [#allocation4], %s178
        %s180 = sand.u32 %s94, 1
        %s181 = smul.addr %s180, 4
        %s182 = scalar_lea.vmem [#allocation5], %s181
        %s183 = smul.u32 2, %s25
        %p184 = scmp.lt.s32.totalorder %s24, 1
        %s185 = scalar_select %p184, %s24, 1
        %s186 = smul.addr %s185, 4
        %s187 = scalar_lea.vmem %s1, %s186
        %v188 = vld [vmem:[%s158] sm:$0xff]
        %p189 = scmp.eq.s32.totalorder %s25, 0
        // Predicated region
        $region29: #{tpu_custom_call.1} parent=23 // pred_check
          %p190 = pneg %p189
        $region30: #{tpu_custom_call.1} parent=23 // pred_check_branch
          %192 = sbr.rel (%p190) target = $region32
        $region31: #{tpu_custom_call.1} parent=23 // pred_region
          %vm193 = vcmask 3072
          %194 = vst.msk [vmem:[%s187] sm:$0xf] %vm193, 0.0
          %vm195 = vcmask 27648
          %196 = vst.msk [vmem:[%s182] sm:$0xf] %vm195, 0.0
        $region32: #{tpu_custom_call.1} parent=23 // pred_fallthru
          _
        %v197 = vld [vmem:[%s187] sm:$0xf]
        %v199 = vcombine.high %v188, %v188
        %vm201 = vcmask 1043456
        %v202 = vsel %vm201, %v188, 0.0
        %v203 = vsel %vm201, %v199, 0.0
        %v204 = vadd.f32 %v202, %v203
        %205 = vadd.xlane.f32.xlu0 %v204
        %v206 = vpop.xlane.xlu0 %205
        %v207 = vadd.f32 %v197, %v206
        %vm208 = vcmask 3072
        %209 = vst.msk [vmem:[%s187] sm:$0xf] %vm208, %v207
        %v210 = vlaneseq
        %v211 = vand.u32 %v210, 127
        %v212 = vlaneseq
        %v213 = vshrl.u32 %v212, 7
        %v214 = vsub.s32 0, %v213
        %v215 = vrot.slane %v188, %v214
        %v216 = vlaneseq
        %v217 = vshrl.u32 %v216, 7
        %v218 = vsub.s32 4, %v217
        %v219 = vrot.slane %v188, %v218
        %v222 = vlaneseq
        %v223 = vshrl.u32 %v222, 7
        %v224 = vsub.s32 0, %v223
        %v225 = vrot.slane %v215, %v224
        %v226 = vlaneseq
        %v227 = vshrl.u32 %v226, 7
        %v228 = vsub.s32 0, %v227
        %v229 = vrot.slane %v219, %v228
        %v232 = vcombine.low %v225, %v229
        %v234 = vmul.f32 %v188, %v232
        %v236 = vcombine.high %v234, %v234
        %v238 = vsel %vm201, %v234, 0.0
        %v239 = vsel %vm201, %v236, 0.0
        %v240 = vadd.f32 %v238, %v239
        %241 = vadd.xlane.f32.xlu0 %v240
        %v242 = vpop.xlane.xlu0 %241
        %vm243 = vcmp.eq.s32.totalorder %v211, 0
        %v244 = vsel %vm243, %v242, 0.0
        %v245 = vadd.f32 %v244, 0.0
        %v246 = vlaneseq
        %v247 = vshrl.u32 %v246, 7
        %v248 = vsub.s32 1, %v247
        %v249 = vrot.slane %v188, %v248
        %v250 = vlaneseq
        %v251 = vshrl.u32 %v250, 7
        %v252 = vsub.s32 5, %v251
        %v253 = vrot.slane %v188, %v252
        %v256 = vlaneseq
        %v257 = vshrl.u32 %v256, 7
        %v258 = vsub.s32 1, %v257
        %v259 = vrot.slane %v249, %v258
        %v260 = vlaneseq
        %v261 = vshrl.u32 %v260, 7
        %v262 = vsub.s32 1, %v261
        %v263 = vrot.slane %v253, %v262
        %v266 = vcombine.low %v259, %v263
        %v268 = vmul.f32 %v188, %v266
        %v270 = vcombine.high %v268, %v268
        %v272 = vsel %vm201, %v268, 0.0
        %v273 = vsel %vm201, %v270, 0.0
        %v274 = vadd.f32 %v272, %v273
        %275 = vadd.xlane.f32.xlu0 %v274
        %v276 = vpop.xlane.xlu0 %275
        %vm277 = vcmp.eq.s32.totalorder %v211, 1
        %v278 = vsel %vm277, %v276, 0.0
        %v279 = vadd.f32 %v245, %v278
        %v280 = vlaneseq
        %v281 = vshrl.u32 %v280, 7
        %v282 = vsub.s32 2, %v281
        %v283 = vrot.slane %v188, %v282
        %v284 = vlaneseq
        %v285 = vshrl.u32 %v284, 7
        %v286 = vsub.s32 6, %v285
        %v287 = vrot.slane %v188, %v286
        %v290 = vlaneseq
        %v291 = vshrl.u32 %v290, 7
        %v292 = vsub.s32 2, %v291
        %v293 = vrot.slane %v283, %v292
        %v294 = vlaneseq
        %v295 = vshrl.u32 %v294, 7
        %v296 = vsub.s32 2, %v295
        %v297 = vrot.slane %v287, %v296
        %v300 = vcombine.low %v293, %v297
        %v302 = vmul.f32 %v188, %v300
        %v304 = vcombine.high %v302, %v302
        %v306 = vsel %vm201, %v302, 0.0
        %v307 = vsel %vm201, %v304, 0.0
        %v308 = vadd.f32 %v306, %v307
        %309 = vadd.xlane.f32.xlu0 %v308
        %v310 = vpop.xlane.xlu0 %309
        %vm311 = vcmp.eq.s32.totalorder %v211, 2
        %v312 = vsel %vm311, %v310, 0.0
        %v313 = vadd.f32 %v279, %v312
        %v314 = vlaneseq
        %v315 = vshrl.u32 %v314, 7
        %v316 = vsub.s32 3, %v315
        %v317 = vrot.slane %v188, %v316
        %v318 = vlaneseq
        %v319 = vshrl.u32 %v318, 7
        %v320 = vsub.s32 7, %v319
        %v321 = vrot.slane %v188, %v320
        %v324 = vlaneseq
        %v325 = vshrl.u32 %v324, 7
        %v326 = vsub.s32 3, %v325
        %v327 = vrot.slane %v317, %v326
        %v328 = vlaneseq
        %v329 = vshrl.u32 %v328, 7
        %v330 = vsub.s32 3, %v329
        %v331 = vrot.slane %v321, %v330
        %v334 = vcombine.low %v327, %v331
        %v336 = vmul.f32 %v188, %v334
        %v338 = vcombine.high %v336, %v336
        %v340 = vsel %vm201, %v336, 0.0
        %v341 = vsel %vm201, %v338, 0.0
        %v342 = vadd.f32 %v340, %v341
        %343 = vadd.xlane.f32.xlu0 %v342
        %v344 = vpop.xlane.xlu0 %343
        %vm345 = vcmp.eq.s32.totalorder %v211, 3
        %v346 = vsel %vm345, %v344, 0.0
        %v347 = vadd.f32 %v313, %v346
        %v348 = vld [vmem:[%s182] sm:$0xf]
        %v349 = vadd.f32 %v348, %v347
        %vm350 = vcmask 27648
        %351 = vst.msk [vmem:[%s182] sm:$0xf] %vm350, %v349
        %p352 = scmp.lt.s32.totalorder %s24, 1
        %s353 = scalar_select %p352, %s24, 1
        %s354 = smul.addr %s353, 4
        %s355 = scalar_lea.vmem %s1, %s354
        %s356 = sand.u32 %s94, 1
        %s357 = scalar_lea.sflag [#allocation4], %s356
        %s358 = sand.u32 %s94, 1
        %s359 = smul.addr %s358, 4
        %s360 = scalar_lea.vmem [#allocation5], %s359
        // Predicated region
        $region33: #{tpu_custom_call.1} parent=23 // pred_check
          %p361 = pneg %p78
        $region34: #{tpu_custom_call.1} parent=23 // pred_check_branch
          %363 = sbr.rel (%p361) target = $region36
        $region35: #{tpu_custom_call.1} parent=23 // pred_region
          _
        $region36: #{tpu_custom_call.1} parent=23 // pred_fallthru
          _
        // Predicated region
        $region37: #{tpu_custom_call.1} parent=23 // pred_check
          %p364 = pneg %p104
        $region38: #{tpu_custom_call.1} parent=23 // pred_check_branch
          %366 = sbr.rel (%p364) target = $region40
        $region39: #{tpu_custom_call.1} parent=23 // pred_region
          %s368 = ssub.s32 64, 64
          %369 = vsyncadd %s357, %s368
          %s370 = smul.addr %s24, 64
          %s371 = scalar_lea.hbm %s2, %s370
          %s373 = sshll.u32 %s360, 4
          %s374 = int_to_ptr.vmem [resolvable:$true] %s373
          %376 = dma.vmem_to_hbm [thread:$0]  %s374, 64, %s371, %s357
        $region40: #{tpu_custom_call.1} parent=23 // pred_fallthru
          _
      $region24: #{tpu_custom_call.1} parent=5 // pred_fallthru
        _
      %p377 = scmp.le.s32.totalorder 2, %s15
      // Predicated region
      $region41: #{tpu_custom_call.1} parent=5 // pred_check
        %p378 = pneg %p377
      $region42: #{tpu_custom_call.1} parent=5 // pred_check_branch
        %380 = sbr.rel (%p378) target = $region44
      $region43: #{tpu_custom_call.1} parent=5 // pred_region
        %s381 = ssub.s32 %s15, 2
        // Predicated region
        $region45: #{tpu_custom_call.1} parent=43 // pred_check
          %p382 = pneg %p84
        $region46: #{tpu_custom_call.1} parent=43 // pred_check_branch
          %384 = sbr.rel (%p382) target = $region48
        $region47: #{tpu_custom_call.1} parent=43 // pred_region
          %p385 = scmp.lt.s32.totalorder %s26, 1
          %s386 = scalar_select %p385, %s26, 1
          %s387 = smul.addr %s386, 4
          %s388 = scalar_lea.vmem %s1, %s387
        $region48: #{tpu_custom_call.1} parent=43 // pred_fallthru
          _
        // Predicated region
        $region49: #{tpu_custom_call.1} parent=43 // pred_check
          %p389 = pneg %p110
        $region50: #{tpu_custom_call.1} parent=43 // pred_check_branch
          %391 = sbr.rel (%p389) target = $region52
        $region51: #{tpu_custom_call.1} parent=43 // pred_region
          %s392 = sand.u32 %s95, 1
          %s393 = scalar_lea.sflag [#allocation4], %s392
          %s394 = sand.u32 %s95, 1
          %s395 = smul.addr %s394, 4
          %s396 = scalar_lea.vmem [#allocation5], %s395
          %397 = dma.done %s393, 64
        $region52: #{tpu_custom_call.1} parent=43 // pred_fallthru
          _
      $region44: #{tpu_custom_call.1} parent=5 // pred_fallthru
        _
    $region6: #{tpu_custom_call.1} parent=1 // loop_footer
      %s19 = sadd.s32 1, %s15
    $region7: #{tpu_custom_call.1} parent=1 // loop_footer_branch
      %14 = sbr.rel target = $region3
    $region8: #{tpu_custom_call.1} parent=1 // loop_exit
      _
    %398 = vsyncpa [#allocation3], 1
    %s399 = scalar_lea.sflag [#allocation3], 1
    %400 = vsyncpa %s399, 1
    %401 = vsyncpa [#allocation4], 1
    %s402 = scalar_lea.sflag [#allocation4], 1
    %403 = vsyncpa %s402, 1

</llo_original>
